<compile_context>
chip_gen: v7x
topology: tpu7x:2x2x1
jax: 0.10.0
libtpu: 0.0.40
codegen_flags: <defaults>
</compile_context>

<pallas_src>
import jax
import jax.numpy as jnp
from jax.experimental import pallas as pl
from jax.experimental.pallas import tpu as pltpu


def _round_up(x: int, m: int) -> int:
    return ((x + m - 1) // m) * m


def _decoder_kernel(z_ref, w1_ref, b1_ref, w2_ref, b2_ref, out_ref):
    # Layer 1: (TM, L) @ (L, M) -> f32, + b1, ReLU.
    h = jnp.dot(z_ref[...], w1_ref[...], preferred_element_type=jnp.float32)
    h = jnp.maximum(h + b1_ref[...], 0.0)
    # Layer 2: (TM, M) @ (M, O) -> f32, + b2, store directly at real width O.
    h = h.astype(w2_ref.dtype)
    o = jnp.dot(h, w2_ref[...], preferred_element_type=jnp.float32)
    out_ref[...] = o + b2_ref[...]


def decoder_forward(z, w1_t, b1, w2_t, b2, compute_dtype=jnp.float32):
    """Decoder forward pass.

    z    : (B, latent)
    w1_t : (latent, mid)   -- Linear1 weight, pre-transposed to (in, out)
    b1   : (mid,)
    w2_t : (mid, out)      -- Linear2 weight, pre-transposed to (in, out)
    b2   : (out,)
    compute_dtype : dtype used for the matmul operands (f32 or bf16); bias
                    add / ReLU / accumulation / output are always f32.
    returns (B, out) float32
    """
    z = jnp.asarray(z, compute_dtype)
    w1_t = jnp.asarray(w1_t, compute_dtype)
    w2_t = jnp.asarray(w2_t, compute_dtype)
    b1 = jnp.asarray(b1, jnp.float32).reshape(1, -1)
    b2 = jnp.asarray(b2, jnp.float32).reshape(1, -1)

    B, latent = z.shape
    mid = w1_t.shape[1]
    out_size = w2_t.shape[1]

    # ---- batch tiling -------------------------------------------------------
    # Sublane-align the batch (multiple of 8).  Feature dims stay unpadded:
    # full-extent last dims are exempt from the 128-lane rule, and padding them
    # in HBM would multiply the memory traffic of this mem-bound kernel.
    TM_MAX = 512  # ~0.35 us per grid step; 512-row tiles sit near HBM roofline
    Bp = _round_up(B, 8)
    if Bp <= TM_MAX:
        if Bp >= 16 and (Bp // 2) % 8 == 0:
            # >=2 independent batch tiles so v7x's second TensorCore has work.
            TM = Bp // 2
        else:
            TM = Bp
    else:
        TM = TM_MAX
        Bp = _round_up(Bp, TM)

    zp = z if Bp == B else jnp.pad(z, ((0, Bp - B), (0, 0)))
    grid = (Bp // TM,)

    # ---- VMEM sanity (resident weights) ------------------------------------
    w_itemsize = jnp.dtype(compute_dtype).itemsize
    resident_weight_bytes = (latent * mid + mid * out_size) * w_itemsize
    # TODO(synk): tiled-reduction fallback if this nears the v7x scoped limit.
    assert resident_weight_bytes < 16 * 1024 * 1024, (
        "resident-weight design needs a tiled fallback at this size")

    # ---- cost hint (real, unpadded bytes) -----------------------------------
    flops = 2 * B * (latent * mid + mid * out_size)
    bytes_accessed = (
        B * latent * w_itemsize
        + (latent * mid + mid * out_size) * w_itemsize
        + (mid + out_size) * 4
        + B * out_size * 4
    )
    cost = pl.CostEstimate(flops=flops, transcendentals=0,
                           bytes_accessed=bytes_accessed)

    out_padded = pl.pallas_call(
        _decoder_kernel,
        out_shape=jax.ShapeDtypeStruct((Bp, out_size), jnp.float32),
        grid_spec=pl.GridSpec(
            grid=grid,
            in_specs=[
                # z: blocked over batch -> pipelined / double-buffered.
                pl.BlockSpec((TM, latent), lambda i: (i, 0)),
                # Weights / biases: same block every step -> VMEM-resident.
                pl.BlockSpec((latent, mid), lambda i: (0, 0)),
                pl.BlockSpec((1, mid), lambda i: (0, 0)),
                pl.BlockSpec((mid, out_size), lambda i: (0, 0)),
                pl.BlockSpec((1, out_size), lambda i: (0, 0)),
            ],
            out_specs=pl.BlockSpec((TM, out_size), lambda i: (i, 0)),
        ),
        compiler_params=pltpu.CompilerParams(
            # Batch tiles are independent -> shard across v7x's 2 TensorCores.
            dimension_semantics=("parallel",),
        ),
        cost_estimate=cost,
    )(zp, w1_t, b1, w2_t, b2)

    # Padded batch rows are relu(b1)@W2 + b2 (nonzero) -- slice them off.
    return out_padded if Bp == B else out_padded[:B]


def init_decoder_params(key, latent_dims, output_size):
    """Deterministic init matching nn.Linear's U(-1/sqrt(fan_in), 1/sqrt(fan_in)).

    Weights are returned pre-transposed to (in, out); no padding is needed
    anymore (the kernel consumes the real shapes directly).
    """
    midsize = latent_dims + (output_size - latent_dims) // 2
    k1, k2, k3, k4 = jax.random.split(key, 4)

    bound1 = 1.0 / (latent_dims ** 0.5)
    w1 = jax.random.uniform(k1, (midsize, latent_dims), jnp.float32, -bound1, bound1)
    b1 = jax.random.uniform(k2, (midsize,), jnp.float32, -bound1, bound1)

    bound2 = 1.0 / (midsize ** 0.5)
    w2 = jax.random.uniform(k3, (output_size, midsize), jnp.float32, -bound2, bound2)
    b2 = jax.random.uniform(k4, (output_size,), jnp.float32, -bound2, bound2)

    return (w1.T, b1, w2.T, b2)


def reference_forward(z, w1_t, b1, w2_t, b2):
    h = jnp.maximum(z @ w1_t + b1[None, :], 0.0)
    return h @ w2_t + b2[None, :]


if __name__ == "__main__":
    latent_dims = 8
    output_size = 32
    batch = 4

    key = jax.random.PRNGKey(0)
    kz, kp = jax.random.split(key)

    z = jax.random.normal(kz, (batch, latent_dims), dtype=jnp.float32)
    w1_t, b1, w2_t, b2 = init_decoder_params(kp, latent_dims, output_size)

    ref = reference_forward(z, w1_t, b1, w2_t, b2)

    # f32 path (matches the module semantics up to f64->f32).
    fwd_f32 = jax.jit(decoder_forward)
    out = jax.block_until_ready(fwd_f32(z, w1_t, b1, w2_t, b2))
    assert out.shape == (batch, output_size)
    assert jnp.allclose(out, ref, atol=1e-5, rtol=1e-5)

    # bf16-matmul path (halves HBM traffic of z / weights; looser tolerance).
    fwd_bf16 = jax.jit(
        lambda *a: decoder_forward(*a, compute_dtype=jnp.bfloat16))
    out_bf16 = jax.block_until_ready(fwd_bf16(z, w1_t, b1, w2_t, b2))
    assert out_bf16.shape == (batch, output_size)
    assert jnp.allclose(out_bf16, ref, atol=5e-2, rtol=5e-2)

    print("KERNEL_OK")
</pallas_src>

<mosaic_0001>
module attributes {stable_mosaic.version = 11 : i64} {
  func.func @_decoder_kernel(%arg0: i32, %arg1: memref<8x8xf32, #tpu.memory_space<vmem>>, %arg2: memref<8x20xf32, #tpu.memory_space<vmem>>, %arg3: memref<1x20xf32, #tpu.memory_space<vmem>>, %arg4: memref<20x32xf32, #tpu.memory_space<vmem>>, %arg5: memref<1x32xf32, #tpu.memory_space<vmem>>, %arg6: memref<8x32xf32, #tpu.memory_space<vmem>>) attributes {dimension_semantics = [#tpu.dimension_semantics<parallel>], iteration_bounds = array<i64: 1>, scalar_prefetch = 0 : i64, scratch_operands = 0 : i64, tpu.core_type = #tpu.core_type<tc>, window_params = [{transform_indices = @transform_0, window_bounds = array<i64: 8, 8>}, {pipeline_mode = #tpu.pipeline_mode<synchronous>, transform_indices = @transform_1, window_bounds = array<i64: 8, 20>}, {pipeline_mode = #tpu.pipeline_mode<synchronous>, transform_indices = @transform_2, window_bounds = array<i64: 1, 20>}, {pipeline_mode = #tpu.pipeline_mode<synchronous>, transform_indices = @transform_3, window_bounds = array<i64: 20, 32>}, {pipeline_mode = #tpu.pipeline_mode<synchronous>, transform_indices = @transform_4, window_bounds = array<i64: 1, 32>}, {transform_indices = @transform_5, window_bounds = array<i64: 8, 32>}]} {
    %c0 = arith.constant 0 : index
    %c0_0 = arith.constant 0 : index
    %0 = vector.load %arg1[%c0, %c0_0] : memref<8x8xf32, #tpu.memory_space<vmem>>, vector<8x8xf32>
    %c0_1 = arith.constant 0 : index
    %c0_2 = arith.constant 0 : index
    %1 = vector.load %arg2[%c0_1, %c0_2] : memref<8x20xf32, #tpu.memory_space<vmem>>, vector<8x20xf32>
    %cst = arith.constant dense<0.000000e+00> : vector<8x20xf32>
    %2 = tpu.matmul %0, %1, %cst {dimension_numbers = #tpu.dot_dimension_numbers<[1], [0], [0], [1], [0, 0, 1, 1], [], []>} : vector<8x8xf32>, vector<8x20xf32>, vector<8x20xf32> -> vector<8x20xf32>
    %c0_3 = arith.constant 0 : index
    %c0_4 = arith.constant 0 : index
    %3 = vector.load %arg3[%c0_3, %c0_4] : memref<1x20xf32, #tpu.memory_space<vmem>>, vector<1x20xf32>
    %4 = vector.broadcast %3 : vector<1x20xf32> to vector<8x20xf32>
    %5 = arith.addf %2, %4 : vector<8x20xf32>
    %cst_5 = arith.constant 0.000000e+00 : f32
    %6 = vector.broadcast %cst_5 : f32 to vector<8x20xf32>
    %7 = arith.maximumf %5, %6 : vector<8x20xf32>
    %c0_6 = arith.constant 0 : index
    %c0_7 = arith.constant 0 : index
    %8 = vector.load %arg4[%c0_6, %c0_7] : memref<20x32xf32, #tpu.memory_space<vmem>>, vector<20x32xf32>
    %cst_8 = arith.constant dense<0.000000e+00> : vector<8x32xf32>
    %9 = tpu.matmul %7, %8, %cst_8 {dimension_numbers = #tpu.dot_dimension_numbers<[1], [0], [0], [1], [0, 0, 1, 1], [], []>} : vector<8x20xf32>, vector<20x32xf32>, vector<8x32xf32> -> vector<8x32xf32>
    %c0_9 = arith.constant 0 : index
    %c0_10 = arith.constant 0 : index
    %10 = vector.load %arg5[%c0_9, %c0_10] : memref<1x32xf32, #tpu.memory_space<vmem>>, vector<1x32xf32>
    %11 = vector.broadcast %10 : vector<1x32xf32> to vector<8x32xf32>
    %12 = arith.addf %9, %11 : vector<8x32xf32>
    %c0_11 = arith.constant 0 : index
    %c0_12 = arith.constant 0 : index
    %13 = vector.load %arg6[%c0_11, %c0_12] : memref<8x32xf32, #tpu.memory_space<vmem>>, vector<8x32xf32>
    tpu.vector_store %arg6[%c0_11, %c0_12], %12 {strides = array<i32>} : memref<8x32xf32, #tpu.memory_space<vmem>>, vector<8x32xf32>,
    return
  }
  func.func @transform_0(%arg0: i32) -> (i32, i32) {
    %c0_i32 = arith.constant 0 : i32
    %c0_i32_0 = arith.constant 0 : i32
    return %arg0, %c0_i32 : i32, i32
  }
  func.func @transform_1(%arg0: i32) -> (i32, i32) {
    %c0_i32 = arith.constant 0 : i32
    %c0_i32_0 = arith.constant 0 : i32
    %c0_i32_1 = arith.constant 0 : i32
    return %c0_i32, %c0_i32_0 : i32, i32
  }
  func.func @transform_2(%arg0: i32) -> (i32, i32) {
    %c0_i32 = arith.constant 0 : i32
    %c0_i32_0 = arith.constant 0 : i32
    %c0_i32_1 = arith.constant 0 : i32
    return %c0_i32, %c0_i32_0 : i32, i32
  }
  func.func @transform_3(%arg0: i32) -> (i32, i32) {
    %c0_i32 = arith.constant 0 : i32
    %c0_i32_0 = arith.constant 0 : i32
    %c0_i32_1 = arith.constant 0 : i32
    return %c0_i32, %c0_i32_0 : i32, i32
  }
  func.func @transform_4(%arg0: i32) -> (i32, i32) {
    %c0_i32 = arith.constant 0 : i32
    %c0_i32_0 = arith.constant 0 : i32
    %c0_i32_1 = arith.constant 0 : i32
    return %c0_i32, %c0_i32_0 : i32, i32
  }
  func.func @transform_5(%arg0: i32) -> (i32, i32) {
    %c0_i32 = arith.constant 0 : i32
    %c0_i32_0 = arith.constant 0 : i32
    return %arg0, %c0_i32 : i32, i32
  }
}

</mosaic_0001>

<llo_original>
// kernel: decoder_forward.1
$region0: #{decoder_forward.1}
  #allocation0 [shape = 'u32[]', space=smem, size = 0x4, offset = 0x4, fixed_abs, tag = 'smem constant byte address 0x4 - core index']
  #allocation1 [shape = 'u32[144,128]{1,0:T(1,128)}', space=vmem, size = 0x12000, scoped, tag = 'internal scratch']
  %s0 = inlined_call_operand.vmem [shape: f32[8,8], index: 0, kind: input, shape index: {}]
  %s1 = inlined_call_operand.hbm [shape: f32[8,20], index: 1, kind: input, shape index: {}]
  %s2 = inlined_call_operand.vmem [shape: f32[1,20], index: 2, kind: input, shape index: {}]
  %s3 = inlined_call_operand.vmem [shape: f32[20,32], index: 3, kind: input, shape index: {}]
  %s4 = inlined_call_operand.vmem [shape: f32[1,32], index: 4, kind: input, shape index: {}]
  %s5 = inlined_call_operand.vmem [shape: f32[8,32], index: 5, kind: output, shape index: {}]
  %s6 = sld [smem:[#allocation0]]
  $region34: #{decoder_forward.1} parent=0
    _
  %s8 = ssub.s32 1, %s6
  %s9 = scalar_select 0, %s8, %s6
  $region1: #{decoder_forward.1} parent=0
    #allocation2 [shape = 'u8[4096]{0}', space=vmem, size = 0x1000, scoped, tag = 'input window, operand 1, single buffered']
    #allocation3 [shape = 's32[1]{0}', space=sflag, size = 0x4, scoped, tag = 'scoped memory for decoder_forward.1']
    %10 = vsyncpa [#allocation3], 0
    // Predicated region
    $region2: #{decoder_forward.1} parent=1 // pred_check
      _
    $region3: #{decoder_forward.1} parent=1 // pred_check_branch
      %12 = sbr.rel (0) target = $region5
    $region4: #{decoder_forward.1} parent=1 // pred_region
      _
    $region5: #{decoder_forward.1} parent=1 // pred_fallthru
      _
    // Predicated region
    $region6: #{decoder_forward.1} parent=1 // pred_check
      _
    $region7: #{decoder_forward.1} parent=1 // pred_check_branch
      %14 = sbr.rel (0) target = $region9
    $region8: #{decoder_forward.1} parent=1 // pred_region
      %s16 = ssub.s32 128, 128
      %17 = vsyncadd [#allocation3], %s16
      %s19 = sshll.u32 [#allocation2], 4
      %s20 = int_to_ptr.vmem [resolvable:$true] %s19
      %22 = dma.hbm_to_vmem [thread:$0]  %s1, 128, %s20, [#allocation3]
    $region9: #{decoder_forward.1} parent=1 // pred_fallthru
      _
    // Predicated region
    $region10: #{decoder_forward.1} parent=1 // pred_check
      _
    $region11: #{decoder_forward.1} parent=1 // pred_check_branch
      %24 = sbr.rel (0) target = $region13
    $region12: #{decoder_forward.1} parent=1 // pred_region
      _
    $region13: #{decoder_forward.1} parent=1 // pred_fallthru
      _
    // Predicated region
    $region14: #{decoder_forward.1} parent=1 // pred_check
      _
    $region15: #{decoder_forward.1} parent=1 // pred_check_branch
      %26 = sbr.rel (0) target = $region17
    $region16: #{decoder_forward.1} parent=1 // pred_region
      _
    $region17: #{decoder_forward.1} parent=1 // pred_fallthru
      _
    // Predicated region
    $region18: #{decoder_forward.1} parent=1 // pred_check
      _
    $region19: #{decoder_forward.1} parent=1 // pred_check_branch
      %28 = sbr.rel (0) target = $region21
    $region20: #{decoder_forward.1} parent=1 // pred_region
      _
    $region21: #{decoder_forward.1} parent=1 // pred_fallthru
      _
    // Predicated region
    $region22: #{decoder_forward.1} parent=1 // pred_check
      _
    $region23: #{decoder_forward.1} parent=1 // pred_check_branch
      %30 = sbr.rel (0) target = $region25
    $region24: #{decoder_forward.1} parent=1 // pred_region
      %31 = dma.done [#allocation3], 128
    $region25: #{decoder_forward.1} parent=1 // pred_fallthru
      _
    %v32 = vld [vmem:[%s0] sm:$0xff]
    %v33 = vld [vmem:[#allocation2] sm:$0xff]
    %v34 = vld [vmem:[%s2] sm:$0x1]
    %v36 = vlaneseq
    %v37 = vshrl.u32 %v36, 7
    %v38 = vsub.s32 0, %v37
    %v39 = vrot.slane %v34, %v38
    %vm41 = vcmask 64512
    %v43 = vsel %vm41, %v32, 0
    %45 = vmatprep.subr.mxu0 0.0
    %46 = vmatpush1.msra.mxu0 %v33
    %47 = vmatprep.subr.mxu0 0.0
    %48 = vmatpush1.msra.mxu0 0.0
    %49 = vmatprep.subr.mxu0 0.0
    %50 = vmatpush1.msra.mxu0 0.0
    %51 = vmatprep.subr.mxu0 0.0
    %52 = vmatpush1.msra.mxu0 0.0
    %53 = vmatprep.subr.mxu0 0.0
    %54 = vmatpush1.msra.mxu0 0.0
    %55 = vmatprep.subr.mxu0 0.0
    %56 = vmatpush1.msra.mxu0 0.0
    %57 = vmatprep.subr.mxu0 0.0
    %58 = vmatpush1.msra.mxu0 0.0
    %59 = vmatprep.subr.mxu0 0.0
    %60 = vmatpush1.msra.mxu0 0.0
    %61 = vmatprep.subr.mxu0 0.0
    %62 = vmatpush1.msra.mxu0 0.0
    %63 = vmatprep.subr.mxu0 0.0
    %64 = vmatpush1.msra.mxu0 0.0
    %65 = vmatprep.subr.mxu0 0.0
    %66 = vmatpush1.msra.mxu0 0.0
    %67 = vmatprep.subr.mxu0 0.0
    %68 = vmatpush1.msra.mxu0 0.0
    %69 = vmatprep.subr.mxu0 0.0
    %70 = vmatpush1.msra.mxu0 0.0
    %71 = vmatprep.subr.mxu0 0.0
    %72 = vmatpush1.msra.mxu0 0.0
    %73 = vmatprep.subr.mxu0 0.0
    %74 = vmatpush1.msra.mxu0 0.0
    %75 = vmatprep.subr.mxu0 0.0
    %76 = vmatpush1.msra.mxu0 0.0
    %77 = vmatprep.subr.mxu0 0.0
    %78 = vmatpush1.msra.mxu0 0.0
    %79 = vmatprep.subr.mxu0 0.0
    %80 = vmatpush1.msra.mxu0 0.0
    %81 = vmatprep.subr.mxu0 0.0
    %82 = vmatpush1.msra.mxu0 0.0
    %83 = vmatprep.subr.mxu0 0.0
    %84 = vmatpush1.msra.mxu0 0.0
    %85 = vmatprep.subr.mxu0 0.0
    %86 = vmatpush1.msra.mxu0 0.0
    %87 = vmatprep.subr.mxu0 0.0
    %88 = vmatpush1.msra.mxu0 0.0
    %89 = vmatprep.subr.mxu0 0.0
    %90 = vmatpush1.msra.mxu0 0.0
    %91 = vmatprep.subr.mxu0 0.0
    %92 = vmatpush1.msra.mxu0 0.0
    %93 = vmatprep.subr.mxu0 0.0
    %94 = vmatpush1.msra.mxu0 0.0
    %95 = vmatprep.subr.mxu0 0.0
    %96 = vmatpush1.msra.mxu0 0.0
    %97 = vmatprep.subr.mxu0 0.0
    %98 = vmatpush1.msra.mxu0 0.0
    %99 = vmatprep.subr.mxu0 0.0
    %100 = vmatpush1.msra.mxu0 0.0
    %101 = vmatprep.subr.mxu0 0.0
    %102 = vmatpush1.msra.mxu0 0.0
    %103 = vmatprep.subr.mxu0 0.0
    %104 = vmatpush1.msra.mxu0 0.0
    %105 = vmatprep.subr.mxu0 0.0
    %106 = vmatpush1.msra.mxu0 0.0
    %107 = vmatprep.subr.mxu0 0.0
    %108 = vmatpush1.msra.mxu0 0.0
    %109 = vmatprep.mubr.f32.mxu0 0.0
    %110 = vmatmul.mubr.f32.gmra.mrb[0].mxu0 %v43
    %v111 = vpop.f32.mrb[0].mxu0
    %v112 = vadd.f32 %v39, %v111
    %v113 = vpop.f32.mrb[0].mxu0
    %114 = vdwg.mxu0
    %v115 = vmax.f32 %v112, 0.0
    %v116 = vld [vmem:[%s3] sm:$0xff]
    %v117 = vld [vmem:[%s3 + $0x8] sm:$0xff]
    %v118 = vld [vmem:[%s3 + $0x10] sm:$0xf]
    %v119 = vld [vmem:[%s4] sm:$0x1]
    %v121 = vlaneseq
    %v122 = vshrl.u32 %v121, 7
    %v123 = vsub.s32 0, %v122
    %v124 = vrot.slane %v119, %v123
    %vm126 = vcmask 162816
    %v128 = vsel %vm126, %v115, 0
    %vm130 = vcmask 1043456
    %v132 = vsel %vm130, %v118, 0
    %134 = vmatprep.subr.mxu0 0.0
    %135 = vmatpush1.msra.mxu0 %v116
    %136 = vmatprep.subr.mxu0 0.0
    %137 = vmatpush1.msra.mxu0 %v117
    %138 = vmatprep.subr.mxu0 0.0
    %139 = vmatpush1.msra.mxu0 %v132
    %140 = vmatprep.subr.mxu0 0.0
    %141 = vmatpush1.msra.mxu0 0.0
    %142 = vmatprep.subr.mxu0 0.0
    %143 = vmatpush1.msra.mxu0 0.0
    %144 = vmatprep.subr.mxu0 0.0
    %145 = vmatpush1.msra.mxu0 0.0
    %146 = vmatprep.subr.mxu0 0.0
    %147 = vmatpush1.msra.mxu0 0.0
    %148 = vmatprep.subr.mxu0 0.0
    %149 = vmatpush1.msra.mxu0 0.0
    %150 = vmatprep.subr.mxu0 0.0
    %151 = vmatpush1.msra.mxu0 0.0
    %152 = vmatprep.subr.mxu0 0.0
    %153 = vmatpush1.msra.mxu0 0.0
    %154 = vmatprep.subr.mxu0 0.0
    %155 = vmatpush1.msra.mxu0 0.0
    %156 = vmatprep.subr.mxu0 0.0
    %157 = vmatpush1.msra.mxu0 0.0
    %158 = vmatprep.subr.mxu0 0.0
    %159 = vmatpush1.msra.mxu0 0.0
    %160 = vmatprep.subr.mxu0 0.0
    %161 = vmatpush1.msra.mxu0 0.0
    %162 = vmatprep.subr.mxu0 0.0
    %163 = vmatpush1.msra.mxu0 0.0
    %164 = vmatprep.subr.mxu0 0.0
    %165 = vmatpush1.msra.mxu0 0.0
    %166 = vmatprep.subr.mxu0 0.0
    %167 = vmatpush1.msra.mxu0 0.0
    %168 = vmatprep.subr.mxu0 0.0
    %169 = vmatpush1.msra.mxu0 0.0
    %170 = vmatprep.subr.mxu0 0.0
    %171 = vmatpush1.msra.mxu0 0.0
    %172 = vmatprep.subr.mxu0 0.0
    %173 = vmatpush1.msra.mxu0 0.0
    %174 = vmatprep.subr.mxu0 0.0
    %175 = vmatpush1.msra.mxu0 0.0
    %176 = vmatprep.subr.mxu0 0.0
    %177 = vmatpush1.msra.mxu0 0.0
    %178 = vmatprep.subr.mxu0 0.0
    %179 = vmatpush1.msra.mxu0 0.0
    %180 = vmatprep.subr.mxu0 0.0
    %181 = vmatpush1.msra.mxu0 0.0
    %182 = vmatprep.subr.mxu0 0.0
    %183 = vmatpush1.msra.mxu0 0.0
    %184 = vmatprep.subr.mxu0 0.0
    %185 = vmatpush1.msra.mxu0 0.0
    %186 = vmatprep.subr.mxu0 0.0
    %187 = vmatpush1.msra.mxu0 0.0
    %188 = vmatprep.subr.mxu0 0.0
    %189 = vmatpush1.msra.mxu0 0.0
    %190 = vmatprep.subr.mxu0 0.0
    %191 = vmatpush1.msra.mxu0 0.0
    %192 = vmatprep.subr.mxu0 0.0
    %193 = vmatpush1.msra.mxu0 0.0
    %194 = vmatprep.subr.mxu0 0.0
    %195 = vmatpush1.msra.mxu0 0.0
    %196 = vmatprep.subr.mxu0 0.0
    %197 = vmatpush1.msra.mxu0 0.0
    %198 = vmatprep.mubr.f32.mxu0 0.0
    %199 = vmatmul.mubr.f32.gmra.mrb[0].mxu0 %v128
    %v200 = vpop.f32.mrb[0].mxu0
    %v201 = vadd.f32 %v124, %v200
    %v202 = vpop.f32.mrb[0].mxu0
    %203 = vdwg.mxu0
    %vm204 = vcmask 261120
    %205 = vst.msk [vmem:[%s5] sm:$0xff] %vm204, %v201
    // Predicated region
    $region26: #{decoder_forward.1} parent=1 // pred_check
      _
    $region27: #{decoder_forward.1} parent=1 // pred_check_branch
      %207 = sbr.rel (0) target = $region29
    $region28: #{decoder_forward.1} parent=1 // pred_region
      _
    $region29: #{decoder_forward.1} parent=1 // pred_fallthru
      _
    // Predicated region
    $region30: #{decoder_forward.1} parent=1 // pred_check
      _
    $region31: #{decoder_forward.1} parent=1 // pred_check_branch
      %209 = sbr.rel (0) target = $region33
    $region32: #{decoder_forward.1} parent=1 // pred_region
      _
    $region33: #{decoder_forward.1} parent=1 // pred_fallthru
      _
    %210 = vsyncpa [#allocation3], 1

</llo_original>
